<compile_context>
chip_gen: v5e
topology: v5e:2x2
jax: 0.10.0
libtpu: 0.0.40
codegen_flags: <defaults>
</compile_context>

<pallas_src>
import jax
import jax.numpy as jnp
from jax.experimental import pallas as pl
from jax.experimental.pallas import tpu as pltpu


def shift_xyz_kernel(pos_ref, w1_ref, b1_ref, w2_ref, b2_ref, out_ref):
    # pos_ref: [3, TM] VMEM block (lane-dense). Keep rows as [1, TM] 2D tiles.
    px = pos_ref[0:1, :]
    py = pos_ref[1:2, :]
    pz = pos_ref[2:3, :]

    # Layer 1: h_j = sigmoid(W1[j,0]*x + W1[j,1]*y + W1[j,2]*z + b1[j])
    # Weights are flat row-major [out, in] -> w1_ref[3*j + k] == W1[j, k].
    h = []
    for j in range(3):
        acc = (w1_ref[3 * j + 0] * px
               + w1_ref[3 * j + 1] * py
               + w1_ref[3 * j + 2] * pz
               + b1_ref[j])
        h.append(jax.nn.sigmoid(acc))

    # Layer 2: y_j = sigmoid(W2[j,0]*h0 + W2[j,1]*h1 + W2[j,2]*h2 + b2[j])
    for j in range(3):
        acc = (w2_ref[3 * j + 0] * h[0]
               + w2_ref[3 * j + 1] * h[1]
               + w2_ref[3 * j + 2] * h[2]
               + b2_ref[j])
        out_ref[j:j + 1, :] = jax.nn.sigmoid(acc)


def shift_xyz(bbox, w1, b1, w2, b2, *, tm=1024):
    """bbox: [N, F>=3] f32. Returns [N, 3] f32 matching the PyTorch module."""
    n = bbox.shape[0]

    # Feature-major pos: [3, N], padded so the lane dim is a multiple of the
    # block size (which itself is a multiple of 128).
    pos_t = bbox[:, :3].T.astype(jnp.float32)                 # [3, N]
    n_lane = ((n + 127) // 128) * 128
    block_n = min(tm, n_lane)                                 # multiple of 128
    n_pad = ((n_lane + block_n - 1) // block_n) * block_n
    pos_t = jnp.pad(pos_t, ((0, 0), (0, n_pad - n)))          # [3, n_pad]

    # Flat scalar parameters for SMEM (row-major [out, in]).
    w1_flat = w1.reshape(-1).astype(jnp.float32)              # [9]
    b1_flat = b1.reshape(-1).astype(jnp.float32)              # [3]
    w2_flat = w2.reshape(-1).astype(jnp.float32)              # [9]
    b2_flat = b2.reshape(-1).astype(jnp.float32)              # [3]

    grid = (n_pad // block_n,)
    smem_spec = pl.BlockSpec(memory_space=pltpu.MemorySpace.SMEM)

    out_t = pl.pallas_call(
        shift_xyz_kernel,
        out_shape=jax.ShapeDtypeStruct((3, n_pad), jnp.float32),
        grid_spec=pl.GridSpec(
            grid=grid,
            in_specs=[
                pl.BlockSpec((3, block_n), lambda i: (0, i)),
                smem_spec,   # w1 (flat, SMEM scalars)
                smem_spec,   # b1
                smem_spec,   # w2
                smem_spec,   # b2
            ],
            out_specs=pl.BlockSpec((3, block_n), lambda i: (0, i)),
        ),
        compiler_params=pltpu.CompilerParams(
            dimension_semantics=("parallel",)),
        cost_estimate=pl.CostEstimate(
            flops=36 * n_pad,
            transcendentals=6 * n_pad,
            bytes_accessed=24 * n_pad + 96),
    )(pos_t, w1_flat, b1_flat, w2_flat, b2_flat)

    # Back to the module's [N, 3] layout (layout plumbing in the wrapper).
    return out_t[:, :n].T


def reference(bbox, w1, b1, w2, b2):
    pos = bbox[:, :3]
    h = jax.nn.sigmoid(pos @ w1.T + b1)
    return jax.nn.sigmoid(h @ w2.T + b2)


if __name__ == "__main__":
    key = jax.random.PRNGKey(0)
    k_bbox, k_w1, k_b1, k_w2, k_b2 = jax.random.split(key, 5)

    N = 8   # small batch of boxes
    F = 7   # [x, y, z, ry, dx, dy, dz]
    bbox = jax.random.normal(k_bbox, (N, F), dtype=jnp.float32)

    # Deterministic "Linear(3, 3)" parameters (PyTorch layout: weight [out, in]).
    w1 = jax.random.normal(k_w1, (3, 3), dtype=jnp.float32) * 0.5
    b1 = jax.random.normal(k_b1, (3,), dtype=jnp.float32) * 0.1
    w2 = jax.random.normal(k_w2, (3, 3), dtype=jnp.float32) * 0.5
    b2 = jax.random.normal(k_b2, (3,), dtype=jnp.float32) * 0.1

    y = shift_xyz(bbox, w1, b1, w2, b2)
    y = jax.block_until_ready(y)

    y_ref = reference(bbox, w1, b1, w2, b2)
    assert y.shape == (N, 3)
    assert jnp.allclose(y, y_ref, atol=1e-5, rtol=1e-5)

    print("KERNEL_OK")
</pallas_src>

<mosaic_0001>
module attributes {stable_mosaic.version = 11 : i64} {
  func.func @shift_xyz_kernel(%arg0: i32, %arg1: memref<3x128xf32, #tpu.memory_space<vmem>>, %arg2: memref<9xf32, #tpu.memory_space<smem>>, %arg3: memref<3xf32, #tpu.memory_space<smem>>, %arg4: memref<9xf32, #tpu.memory_space<smem>>, %arg5: memref<3xf32, #tpu.memory_space<smem>>, %arg6: memref<3x128xf32, #tpu.memory_space<vmem>>) attributes {dimension_semantics = [#tpu.dimension_semantics<parallel>], iteration_bounds = array<i64: 1>, scalar_prefetch = 0 : i64, scratch_operands = 0 : i64, tpu.core_type = #tpu.core_type<tc>, window_params = [{transform_indices = @transform_0, window_bounds = array<i64: 3, 128>}, {transform_indices = @transform_1, window_bounds = array<i64: 9>}, {transform_indices = @transform_2, window_bounds = array<i64: 3>}, {transform_indices = @transform_3, window_bounds = array<i64: 9>}, {transform_indices = @transform_4, window_bounds = array<i64: 3>}, {transform_indices = @transform_5, window_bounds = array<i64: 3, 128>}]} {
    %c0 = arith.constant 0 : index
    %c0_0 = arith.constant 0 : index
    %0 = vector.load %arg1[%c0, %c0_0] : memref<3x128xf32, #tpu.memory_space<vmem>>, vector<1x128xf32>
    %c1 = arith.constant 1 : index
    %c0_1 = arith.constant 0 : index
    %1 = vector.load %arg1[%c1, %c0_1] : memref<3x128xf32, #tpu.memory_space<vmem>>, vector<1x128xf32>
    %c2 = arith.constant 2 : index
    %c0_2 = arith.constant 0 : index
    %2 = vector.load %arg1[%c2, %c0_2] : memref<3x128xf32, #tpu.memory_space<vmem>>, vector<1x128xf32>
    %c0_3 = arith.constant 0 : index
    %3 = memref.load %arg2[%c0_3] : memref<9xf32, #tpu.memory_space<smem>>
    %4 = vector.broadcast %3 : f32 to vector<1x128xf32>
    %5 = arith.mulf %4, %0 : vector<1x128xf32>
    %c1_4 = arith.constant 1 : index
    %6 = memref.load %arg2[%c1_4] : memref<9xf32, #tpu.memory_space<smem>>
    %7 = vector.broadcast %6 : f32 to vector<1x128xf32>
    %8 = arith.mulf %7, %1 : vector<1x128xf32>
    %9 = arith.addf %5, %8 : vector<1x128xf32>
    %c2_5 = arith.constant 2 : index
    %10 = memref.load %arg2[%c2_5] : memref<9xf32, #tpu.memory_space<smem>>
    %11 = vector.broadcast %10 : f32 to vector<1x128xf32>
    %12 = arith.mulf %11, %2 : vector<1x128xf32>
    %13 = arith.addf %9, %12 : vector<1x128xf32>
    %c0_6 = arith.constant 0 : index
    %14 = memref.load %arg3[%c0_6] : memref<3xf32, #tpu.memory_space<smem>>
    %15 = vector.broadcast %14 : f32 to vector<1x128xf32>
    %16 = arith.addf %13, %15 : vector<1x128xf32>
    %17 = arith.negf %16 : vector<1x128xf32>
    %18 = math.exp %17 : vector<1x128xf32>
    %cst = arith.constant 1.000000e+00 : f32
    %19 = vector.broadcast %cst : f32 to vector<1x128xf32>
    %20 = arith.addf %19, %18 : vector<1x128xf32>
    %21 = arith.divf %19, %20 : vector<1x128xf32>
    %c3 = arith.constant 3 : index
    %22 = memref.load %arg2[%c3] : memref<9xf32, #tpu.memory_space<smem>>
    %23 = vector.broadcast %22 : f32 to vector<1x128xf32>
    %24 = arith.mulf %23, %0 : vector<1x128xf32>
    %c4 = arith.constant 4 : index
    %25 = memref.load %arg2[%c4] : memref<9xf32, #tpu.memory_space<smem>>
    %26 = vector.broadcast %25 : f32 to vector<1x128xf32>
    %27 = arith.mulf %26, %1 : vector<1x128xf32>
    %28 = arith.addf %24, %27 : vector<1x128xf32>
    %c5 = arith.constant 5 : index
    %29 = memref.load %arg2[%c5] : memref<9xf32, #tpu.memory_space<smem>>
    %30 = vector.broadcast %29 : f32 to vector<1x128xf32>
    %31 = arith.mulf %30, %2 : vector<1x128xf32>
    %32 = arith.addf %28, %31 : vector<1x128xf32>
    %c1_7 = arith.constant 1 : index
    %33 = memref.load %arg3[%c1_7] : memref<3xf32, #tpu.memory_space<smem>>
    %34 = vector.broadcast %33 : f32 to vector<1x128xf32>
    %35 = arith.addf %32, %34 : vector<1x128xf32>
    %36 = arith.negf %35 : vector<1x128xf32>
    %37 = math.exp %36 : vector<1x128xf32>
    %cst_8 = arith.constant 1.000000e+00 : f32
    %38 = vector.broadcast %cst_8 : f32 to vector<1x128xf32>
    %39 = arith.addf %38, %37 : vector<1x128xf32>
    %40 = arith.divf %38, %39 : vector<1x128xf32>
    %c6 = arith.constant 6 : index
    %41 = memref.load %arg2[%c6] : memref<9xf32, #tpu.memory_space<smem>>
    %42 = vector.broadcast %41 : f32 to vector<1x128xf32>
    %43 = arith.mulf %42, %0 : vector<1x128xf32>
    %c7 = arith.constant 7 : index
    %44 = memref.load %arg2[%c7] : memref<9xf32, #tpu.memory_space<smem>>
    %45 = vector.broadcast %44 : f32 to vector<1x128xf32>
    %46 = arith.mulf %45, %1 : vector<1x128xf32>
    %47 = arith.addf %43, %46 : vector<1x128xf32>
    %c8 = arith.constant 8 : index
    %48 = memref.load %arg2[%c8] : memref<9xf32, #tpu.memory_space<smem>>
    %49 = vector.broadcast %48 : f32 to vector<1x128xf32>
    %50 = arith.mulf %49, %2 : vector<1x128xf32>
    %51 = arith.addf %47, %50 : vector<1x128xf32>
    %c2_9 = arith.constant 2 : index
    %52 = memref.load %arg3[%c2_9] : memref<3xf32, #tpu.memory_space<smem>>
    %53 = vector.broadcast %52 : f32 to vector<1x128xf32>
    %54 = arith.addf %51, %53 : vector<1x128xf32>
    %55 = arith.negf %54 : vector<1x128xf32>
    %56 = math.exp %55 : vector<1x128xf32>
    %cst_10 = arith.constant 1.000000e+00 : f32
    %57 = vector.broadcast %cst_10 : f32 to vector<1x128xf32>
    %58 = arith.addf %57, %56 : vector<1x128xf32>
    %59 = arith.divf %57, %58 : vector<1x128xf32>
    %c0_11 = arith.constant 0 : index
    %60 = memref.load %arg4[%c0_11] : memref<9xf32, #tpu.memory_space<smem>>
    %61 = vector.broadcast %60 : f32 to vector<1x128xf32>
    %62 = arith.mulf %61, %21 : vector<1x128xf32>
    %c1_12 = arith.constant 1 : index
    %63 = memref.load %arg4[%c1_12] : memref<9xf32, #tpu.memory_space<smem>>
    %64 = vector.broadcast %63 : f32 to vector<1x128xf32>
    %65 = arith.mulf %64, %40 : vector<1x128xf32>
    %66 = arith.addf %62, %65 : vector<1x128xf32>
    %c2_13 = arith.constant 2 : index
    %67 = memref.load %arg4[%c2_13] : memref<9xf32, #tpu.memory_space<smem>>
    %68 = vector.broadcast %67 : f32 to vector<1x128xf32>
    %69 = arith.mulf %68, %59 : vector<1x128xf32>
    %70 = arith.addf %66, %69 : vector<1x128xf32>
    %c0_14 = arith.constant 0 : index
    %71 = memref.load %arg5[%c0_14] : memref<3xf32, #tpu.memory_space<smem>>
    %72 = vector.broadcast %71 : f32 to vector<1x128xf32>
    %73 = arith.addf %70, %72 : vector<1x128xf32>
    %74 = arith.negf %73 : vector<1x128xf32>
    %75 = math.exp %74 : vector<1x128xf32>
    %cst_15 = arith.constant 1.000000e+00 : f32
    %76 = vector.broadcast %cst_15 : f32 to vector<1x128xf32>
    %77 = arith.addf %76, %75 : vector<1x128xf32>
    %78 = arith.divf %76, %77 : vector<1x128xf32>
    %c0_16 = arith.constant 0 : index
    %c0_17 = arith.constant 0 : index
    %79 = vector.load %arg6[%c0_16, %c0_17] : memref<3x128xf32, #tpu.memory_space<vmem>>, vector<1x128xf32>
    tpu.vector_store %arg6[%c0_16, %c0_17], %78 {strides = array<i32>} : memref<3x128xf32, #tpu.memory_space<vmem>>, vector<1x128xf32>,
    %c3_18 = arith.constant 3 : index
    %80 = memref.load %arg4[%c3_18] : memref<9xf32, #tpu.memory_space<smem>>
    %81 = vector.broadcast %80 : f32 to vector<1x128xf32>
    %82 = arith.mulf %81, %21 : vector<1x128xf32>
    %c4_19 = arith.constant 4 : index
    %83 = memref.load %arg4[%c4_19] : memref<9xf32, #tpu.memory_space<smem>>
    %84 = vector.broadcast %83 : f32 to vector<1x128xf32>
    %85 = arith.mulf %84, %40 : vector<1x128xf32>
    %86 = arith.addf %82, %85 : vector<1x128xf32>
    %c5_20 = arith.constant 5 : index
    %87 = memref.load %arg4[%c5_20] : memref<9xf32, #tpu.memory_space<smem>>
    %88 = vector.broadcast %87 : f32 to vector<1x128xf32>
    %89 = arith.mulf %88, %59 : vector<1x128xf32>
    %90 = arith.addf %86, %89 : vector<1x128xf32>
    %c1_21 = arith.constant 1 : index
    %91 = memref.load %arg5[%c1_21] : memref<3xf32, #tpu.memory_space<smem>>
    %92 = vector.broadcast %91 : f32 to vector<1x128xf32>
    %93 = arith.addf %90, %92 : vector<1x128xf32>
    %94 = arith.negf %93 : vector<1x128xf32>
    %95 = math.exp %94 : vector<1x128xf32>
    %cst_22 = arith.constant 1.000000e+00 : f32
    %96 = vector.broadcast %cst_22 : f32 to vector<1x128xf32>
    %97 = arith.addf %96, %95 : vector<1x128xf32>
    %98 = arith.divf %96, %97 : vector<1x128xf32>
    %c1_23 = arith.constant 1 : index
    %c0_24 = arith.constant 0 : index
    %99 = vector.load %arg6[%c1_23, %c0_24] : memref<3x128xf32, #tpu.memory_space<vmem>>, vector<1x128xf32>
    tpu.vector_store %arg6[%c1_23, %c0_24], %98 {strides = array<i32>} : memref<3x128xf32, #tpu.memory_space<vmem>>, vector<1x128xf32>,
    %c6_25 = arith.constant 6 : index
    %100 = memref.load %arg4[%c6_25] : memref<9xf32, #tpu.memory_space<smem>>
    %101 = vector.broadcast %100 : f32 to vector<1x128xf32>
    %102 = arith.mulf %101, %21 : vector<1x128xf32>
    %c7_26 = arith.constant 7 : index
    %103 = memref.load %arg4[%c7_26] : memref<9xf32, #tpu.memory_space<smem>>
    %104 = vector.broadcast %103 : f32 to vector<1x128xf32>
    %105 = arith.mulf %104, %40 : vector<1x128xf32>
    %106 = arith.addf %102, %105 : vector<1x128xf32>
    %c8_27 = arith.constant 8 : index
    %107 = memref.load %arg4[%c8_27] : memref<9xf32, #tpu.memory_space<smem>>
    %108 = vector.broadcast %107 : f32 to vector<1x128xf32>
    %109 = arith.mulf %108, %59 : vector<1x128xf32>
    %110 = arith.addf %106, %109 : vector<1x128xf32>
    %c2_28 = arith.constant 2 : index
    %111 = memref.load %arg5[%c2_28] : memref<3xf32, #tpu.memory_space<smem>>
    %112 = vector.broadcast %111 : f32 to vector<1x128xf32>
    %113 = arith.addf %110, %112 : vector<1x128xf32>
    %114 = arith.negf %113 : vector<1x128xf32>
    %115 = math.exp %114 : vector<1x128xf32>
    %cst_29 = arith.constant 1.000000e+00 : f32
    %116 = vector.broadcast %cst_29 : f32 to vector<1x128xf32>
    %117 = arith.addf %116, %115 : vector<1x128xf32>
    %118 = arith.divf %116, %117 : vector<1x128xf32>
    %c2_30 = arith.constant 2 : index
    %c0_31 = arith.constant 0 : index
    %119 = vector.load %arg6[%c2_30, %c0_31] : memref<3x128xf32, #tpu.memory_space<vmem>>, vector<1x128xf32>
    tpu.vector_store %arg6[%c2_30, %c0_31], %118 {strides = array<i32>} : memref<3x128xf32, #tpu.memory_space<vmem>>, vector<1x128xf32>,
    return
  }
  func.func @transform_0(%arg0: i32) -> (i32, i32) {
    %c0_i32 = arith.constant 0 : i32
    %c0_i32_0 = arith.constant 0 : i32
    return %c0_i32, %arg0 : i32, i32
  }
  func.func @transform_1(%arg0: i32) -> i32 {
    %c0_i32 = arith.constant 0 : i32
    %c0_i32_0 = arith.constant 0 : i32
    return %c0_i32 : i32
  }
  func.func @transform_2(%arg0: i32) -> i32 {
    %c0_i32 = arith.constant 0 : i32
    %c0_i32_0 = arith.constant 0 : i32
    return %c0_i32 : i32
  }
  func.func @transform_3(%arg0: i32) -> i32 {
    %c0_i32 = arith.constant 0 : i32
    %c0_i32_0 = arith.constant 0 : i32
    return %c0_i32 : i32
  }
  func.func @transform_4(%arg0: i32) -> i32 {
    %c0_i32 = arith.constant 0 : i32
    %c0_i32_0 = arith.constant 0 : i32
    return %c0_i32 : i32
  }
  func.func @transform_5(%arg0: i32) -> (i32, i32) {
    %c0_i32 = arith.constant 0 : i32
    %c0_i32_0 = arith.constant 0 : i32
    return %c0_i32, %arg0 : i32, i32
  }
}

</mosaic_0001>

<llo_original>
// kernel: tpu_custom_call.1
$region0: #{tpu_custom_call.1}
  #allocation0 [shape = 'u32[]', space=smem, size = 0x4, offset = 0x4, fixed_abs, tag = 'smem constant byte address 0x4 - core index']
  #allocation1 [shape = 'u32[72,128]{1,0:T(1,128)}', space=vmem, size = 0x9000, scoped, tag = 'internal scratch']
  %s0 = inlined_call_operand.hbm [shape: f32[3,128], index: 0, kind: input, shape index: {}]
  %s1 = inlined_call_operand.hbm [shape: f32[9], index: 1, kind: input, shape index: {}]
  %s2 = inlined_call_operand.vmem [shape: f32[3], index: 2, kind: input, shape index: {}]
  %s3 = inlined_call_operand.vmem [shape: f32[9], index: 3, kind: input, shape index: {}]
  %s4 = inlined_call_operand.vmem [shape: f32[3], index: 4, kind: input, shape index: {}]
  %s5 = inlined_call_operand.hbm [shape: f32[3,128], index: 5, kind: output, shape index: {}]
  %s6 = sld [smem:[#allocation0]]
  $region50: #{tpu_custom_call.1} parent=0
    _
  %s8 = ssub.s32 1, %s6
  %s9 = scalar_select 0, %s8, %s6
  $region1: #{tpu_custom_call.1} parent=0
    #allocation2 [shape = 'u8[2048]{0}', space=vmem, size = 0x800, scoped, tag = 'input window, operand 0, single buffered']
    #allocation3 [shape = 's32[1]{0}', space=sflag, size = 0x4, scoped, tag = 'scoped memory for tpu_custom_call.1']
    #allocation4 [shape = 's32[1]{0}', space=sflag, size = 0x4, scoped, tag = 'scoped memory for tpu_custom_call.1']
    #allocation5 [shape = 's32[1]{0}', space=sflag, size = 0x4, scoped, tag = 'scoped memory for tpu_custom_call.1']
    #allocation6 [shape = 's32[1]{0}', space=sflag, size = 0x4, scoped, tag = 'scoped memory for tpu_custom_call.1']
    #allocation7 [shape = 'u8[512]{0}', space=smem, size = 0x200, scoped, tag = 'input window, operand 1, single buffered']
    #allocation8 [shape = 'u8[512]{0}', space=smem, size = 0x200, scoped, tag = 'input window, operand 2, single buffered']
    #allocation9 [shape = 'u8[512]{0}', space=smem, size = 0x200, scoped, tag = 'input window, operand 3, single buffered']
    #allocation10 [shape = 's32[1]{0}', space=sflag, size = 0x4, scoped, tag = 'scoped memory for tpu_custom_call.1']
    #allocation11 [shape = 'u8[512]{0}', space=smem, size = 0x200, scoped, tag = 'input window, operand 4, single buffered']
    #allocation12 [shape = 'u8[2048]{0}', space=vmem, size = 0x800, scoped, tag = 'output window, operand 0, single buffered']
    %10 = vsyncpa [#allocation3], 0
    %11 = vsyncpa [#allocation5], 0
    %12 = vsyncpa [#allocation6], 0
    %13 = vsyncpa [#allocation10], 0
    %14 = vsyncpa [#allocation4], 0
    // Predicated region
    $region2: #{tpu_custom_call.1} parent=1 // pred_check
      _
    $region3: #{tpu_custom_call.1} parent=1 // pred_check_branch
      %16 = sbr.rel (0) target = $region5
    $region4: #{tpu_custom_call.1} parent=1 // pred_region
      %18 = vsyncadd [#allocation3], 0
      %s20 = sshll.u32 %s0, 4
      %s21 = int_to_ptr.hbm [resolvable:$true] %s20
      %s22 = sshll.u32 [#allocation2], 4
      %s23 = int_to_ptr.vmem [resolvable:$true] %s22
      %25 = dma.hbm_to_vmem [thread:$0]  %s21, 64, %s23, [#allocation3]
    $region5: #{tpu_custom_call.1} parent=1 // pred_fallthru
      _
    // Predicated region
    $region6: #{tpu_custom_call.1} parent=1 // pred_check
      _
    $region7: #{tpu_custom_call.1} parent=1 // pred_check_branch
      %27 = sbr.rel (0) target = $region9
    $region8: #{tpu_custom_call.1} parent=1 // pred_region
      %29 = vsyncadd [#allocation5], 0
      %s31 = sshll.u32 %s1, 4
      %s32 = int_to_ptr.hbm [resolvable:$true] %s31
      %34 = dma.hbm_to_smem %s32, 16, [#allocation7], [#allocation5]
    $region9: #{tpu_custom_call.1} parent=1 // pred_fallthru
      _
    // Predicated region
    $region10: #{tpu_custom_call.1} parent=1 // pred_check
      _
    $region11: #{tpu_custom_call.1} parent=1 // pred_check_branch
      %36 = sbr.rel (0) target = $region13
    $region12: #{tpu_custom_call.1} parent=1 // pred_region
      %38 = vsyncadd [#allocation6], 0
      %s40 = sshll.u32 %s2, 4
      %s41 = int_to_ptr.vmem [resolvable:$true] %s40
      %43 = dma.vmem_to_smem %s41, 16, [#allocation8], [#allocation6]
    $region13: #{tpu_custom_call.1} parent=1 // pred_fallthru
      _
    // Predicated region
    $region14: #{tpu_custom_call.1} parent=1 // pred_check
      _
    $region15: #{tpu_custom_call.1} parent=1 // pred_check_branch
      %45 = sbr.rel (0) target = $region17
    $region16: #{tpu_custom_call.1} parent=1 // pred_region
      %47 = vsyncadd [#allocation10], 0
      %s49 = sshll.u32 %s3, 4
      %s50 = int_to_ptr.vmem [resolvable:$true] %s49
      %52 = dma.vmem_to_smem %s50, 16, [#allocation9], [#allocation10]
    $region17: #{tpu_custom_call.1} parent=1 // pred_fallthru
      _
    // Predicated region
    $region18: #{tpu_custom_call.1} parent=1 // pred_check
      _
    $region19: #{tpu_custom_call.1} parent=1 // pred_check_branch
      %54 = sbr.rel (0) target = $region21
    $region20: #{tpu_custom_call.1} parent=1 // pred_region
      %56 = vsyncadd [#allocation10], 0
      %s58 = sshll.u32 %s4, 4
      %s59 = int_to_ptr.vmem [resolvable:$true] %s58
      %61 = dma.vmem_to_smem %s59, 16, [#allocation11], [#allocation10]
    $region21: #{tpu_custom_call.1} parent=1 // pred_fallthru
      _
    // Predicated region
    $region22: #{tpu_custom_call.1} parent=1 // pred_check
      _
    $region23: #{tpu_custom_call.1} parent=1 // pred_check_branch
      %63 = sbr.rel (0) target = $region25
    $region24: #{tpu_custom_call.1} parent=1 // pred_region
      %65 = dma.done [#allocation3], 64
    $region25: #{tpu_custom_call.1} parent=1 // pred_fallthru
      _
    // Predicated region
    $region26: #{tpu_custom_call.1} parent=1 // pred_check
      _
    $region27: #{tpu_custom_call.1} parent=1 // pred_check_branch
      %67 = sbr.rel (0) target = $region29
    $region28: #{tpu_custom_call.1} parent=1 // pred_region
      %69 = dma.done [#allocation5], 16
    $region29: #{tpu_custom_call.1} parent=1 // pred_fallthru
      _
    // Predicated region
    $region30: #{tpu_custom_call.1} parent=1 // pred_check
      _
    $region31: #{tpu_custom_call.1} parent=1 // pred_check_branch
      %71 = sbr.rel (0) target = $region33
    $region32: #{tpu_custom_call.1} parent=1 // pred_region
      %73 = dma.done [#allocation6], 16
    $region33: #{tpu_custom_call.1} parent=1 // pred_fallthru
      _
    // Predicated region
    $region34: #{tpu_custom_call.1} parent=1 // pred_check
      _
    $region35: #{tpu_custom_call.1} parent=1 // pred_check_branch
      %75 = sbr.rel (0) target = $region37
    $region36: #{tpu_custom_call.1} parent=1 // pred_region
      %77 = dma.done [#allocation10], 16
    $region37: #{tpu_custom_call.1} parent=1 // pred_fallthru
      _
    // Predicated region
    $region38: #{tpu_custom_call.1} parent=1 // pred_check
      _
    $region39: #{tpu_custom_call.1} parent=1 // pred_check_branch
      %79 = sbr.rel (0) target = $region41
    $region40: #{tpu_custom_call.1} parent=1 // pred_region
      %81 = dma.done [#allocation10], 16
    $region41: #{tpu_custom_call.1} parent=1 // pred_fallthru
      _
    %82 = sfence
    %v83 = vld [vmem:[#allocation2] sm:$0x1]
    %v84 = vld [vmem:[#allocation2 + $0x1] sm:$0x1]
    %v85 = vld [vmem:[#allocation2 + $0x2] sm:$0x1]
    %s86 = sld [smem:[#allocation7]]
    %v87 = vstv %s86
    %v88 = vmul.f32 %v87, %v83
    %s89 = sld [smem:[#allocation7 + $0x1]]
    %v90 = vstv %s89
    %v91 = vmul.f32 %v90, %v84
    %v92 = vadd.f32 %v88, %v91
    %s93 = sld [smem:[#allocation7 + $0x2]]
    %v94 = vstv %s93
    %v95 = vmul.f32 %v94, %v85
    %v96 = vadd.f32 %v92, %v95
    %s97 = sld [smem:[#allocation8]]
    %v98 = vstv %s97
    %v99 = vadd.f32 %v96, %v98
    %v100 = vxor.u32 %v99, 2147483648
    %v101 = vmul.f32 %v100, 1.442695
    %v102 = vpow.pop %v101
    %v103 = vadd.f32 %v102, 1.0
    %v104 = vrcp.pop %v103
    %v105 = vmul.f32 %v103, %v104
    %v106 = vsub.f32 1.0, %v105
    %v107 = vmul.f32 %v104, %v106
    %v108 = vadd.f32 %v104, %v107
    %vm109 = vweird.f32 %v103
    %vm110 = vweird.f32 %v104
    %vm111 = vmor %vm109, %vm110
    %v112 = vsel %vm111, %v104, %v108
    %v113 = vand.u32 2147483647, %v103
    %vm114 = vcmp.eq.f32.partialorder %v113, 8.507059e+37
    %v115 = vand.u32 %v103, 2147483648
    %v116 = vor.u32 1.1754944e-38, %v115
    %v117 = vsel %vm114, %v116, %v112
    %v118 = vmul.f32 1.0, %v117
    %s119 = sld [smem:[#allocation7 + $0x3]]
    %v120 = vstv %s119
    %v121 = vmul.f32 %v120, %v83
    %s122 = sld [smem:[#allocation7 + $0x4]]
    %v123 = vstv %s122
    %v124 = vmul.f32 %v123, %v84
    %v125 = vadd.f32 %v121, %v124
    %s126 = sld [smem:[#allocation7 + $0x5]]
    %v127 = vstv %s126
    %v128 = vmul.f32 %v127, %v85
    %v129 = vadd.f32 %v125, %v128
    %s130 = sld [smem:[#allocation8 + $0x1]]
    %v131 = vstv %s130
    %v132 = vadd.f32 %v129, %v131
    %v133 = vxor.u32 %v132, 2147483648
    %v134 = vmul.f32 %v133, 1.442695
    %v135 = vpow.pop %v134
    %v136 = vadd.f32 %v135, 1.0
    %v137 = vrcp.pop %v136
    %v138 = vmul.f32 %v136, %v137
    %v139 = vsub.f32 1.0, %v138
    %v140 = vmul.f32 %v137, %v139
    %v141 = vadd.f32 %v137, %v140
    %vm142 = vweird.f32 %v136
    %vm143 = vweird.f32 %v137
    %vm144 = vmor %vm142, %vm143
    %v145 = vsel %vm144, %v137, %v141
    %v146 = vand.u32 2147483647, %v136
    %vm147 = vcmp.eq.f32.partialorder %v146, 8.507059e+37
    %v148 = vand.u32 %v136, 2147483648
    %v149 = vor.u32 1.1754944e-38, %v148
    %v150 = vsel %vm147, %v149, %v145
    %v151 = vmul.f32 1.0, %v150
    %s152 = sld [smem:[#allocation7 + $0x6]]
    %v153 = vstv %s152
    %v154 = vmul.f32 %v153, %v83
    %s155 = sld [smem:[#allocation7 + $0x7]]
    %v156 = vstv %s155
    %v157 = vmul.f32 %v156, %v84
    %v158 = vadd.f32 %v154, %v157
    %s159 = sld [smem:[#allocation7 + $0x8]]
    %v160 = vstv %s159
    %v161 = vmul.f32 %v160, %v85
    %v162 = vadd.f32 %v158, %v161
    %s163 = sld [smem:[#allocation8 + $0x2]]
    %v164 = vstv %s163
    %v165 = vadd.f32 %v162, %v164
    %v166 = vxor.u32 %v165, 2147483648
    %v167 = vmul.f32 %v166, 1.442695
    %v168 = vpow.pop %v167
    %v169 = vadd.f32 %v168, 1.0
    %v170 = vrcp.pop %v169
    %v171 = vmul.f32 %v169, %v170
    %v172 = vsub.f32 1.0, %v171
    %v173 = vmul.f32 %v170, %v172
    %v174 = vadd.f32 %v170, %v173
    %vm175 = vweird.f32 %v169
    %vm176 = vweird.f32 %v170
    %vm177 = vmor %vm175, %vm176
    %v178 = vsel %vm177, %v170, %v174
    %v179 = vand.u32 2147483647, %v169
    %vm180 = vcmp.eq.f32.partialorder %v179, 8.507059e+37
    %v181 = vand.u32 %v169, 2147483648
    %v182 = vor.u32 1.1754944e-38, %v181
    %v183 = vsel %vm180, %v182, %v178
    %v184 = vmul.f32 1.0, %v183
    %s185 = sld [smem:[#allocation9]]
    %v186 = vstv %s185
    %v187 = vmul.f32 %v186, %v118
    %s188 = sld [smem:[#allocation9 + $0x1]]
    %v189 = vstv %s188
    %v190 = vmul.f32 %v189, %v151
    %v191 = vadd.f32 %v187, %v190
    %s192 = sld [smem:[#allocation9 + $0x2]]
    %v193 = vstv %s192
    %v194 = vmul.f32 %v193, %v184
    %v195 = vadd.f32 %v191, %v194
    %s196 = sld [smem:[#allocation11]]
    %v197 = vstv %s196
    %v198 = vadd.f32 %v195, %v197
    %v199 = vxor.u32 %v198, 2147483648
    %v200 = vmul.f32 %v199, 1.442695
    %v201 = vpow.pop %v200
    %v202 = vadd.f32 %v201, 1.0
    %v203 = vrcp.pop %v202
    %v204 = vmul.f32 %v202, %v203
    %v205 = vsub.f32 1.0, %v204
    %v206 = vmul.f32 %v203, %v205
    %v207 = vadd.f32 %v203, %v206
    %vm208 = vweird.f32 %v202
    %vm209 = vweird.f32 %v203
    %vm210 = vmor %vm208, %vm209
    %v211 = vsel %vm210, %v203, %v207
    %v212 = vand.u32 2147483647, %v202
    %vm213 = vcmp.eq.f32.partialorder %v212, 8.507059e+37
    %v214 = vand.u32 %v202, 2147483648
    %v215 = vor.u32 1.1754944e-38, %v214
    %v216 = vsel %vm213, %v215, %v211
    %v217 = vmul.f32 1.0, %v216
    %218 = vst [vmem:[#allocation12] sm:$0x1] %v217
    %s219 = sld [smem:[#allocation9 + $0x3]]
    %v220 = vstv %s219
    %v221 = vmul.f32 %v220, %v118
    %s222 = sld [smem:[#allocation9 + $0x4]]
    %v223 = vstv %s222
    %v224 = vmul.f32 %v223, %v151
    %v225 = vadd.f32 %v221, %v224
    %s226 = sld [smem:[#allocation9 + $0x5]]
    %v227 = vstv %s226
    %v228 = vmul.f32 %v227, %v184
    %v229 = vadd.f32 %v225, %v228
    %s230 = sld [smem:[#allocation11 + $0x1]]
    %v231 = vstv %s230
    %v232 = vadd.f32 %v229, %v231
    %v233 = vxor.u32 %v232, 2147483648
    %v234 = vmul.f32 %v233, 1.442695
    %v235 = vpow.pop %v234
    %v236 = vadd.f32 %v235, 1.0
    %v237 = vrcp.pop %v236
    %v238 = vmul.f32 %v236, %v237
    %v239 = vsub.f32 1.0, %v238
    %v240 = vmul.f32 %v237, %v239
    %v241 = vadd.f32 %v237, %v240
    %vm242 = vweird.f32 %v236
    %vm243 = vweird.f32 %v237
    %vm244 = vmor %vm242, %vm243
    %v245 = vsel %vm244, %v237, %v241
    %v246 = vand.u32 2147483647, %v236
    %vm247 = vcmp.eq.f32.partialorder %v246, 8.507059e+37
    %v248 = vand.u32 %v236, 2147483648
    %v249 = vor.u32 1.1754944e-38, %v248
    %v250 = vsel %vm247, %v249, %v245
    %v251 = vmul.f32 1.0, %v250
    %252 = vst [vmem:[#allocation12 + $0x1] sm:$0x1] %v251
    %s253 = sld [smem:[#allocation9 + $0x6]]
    %v254 = vstv %s253
    %v255 = vmul.f32 %v254, %v118
    %s256 = sld [smem:[#allocation9 + $0x7]]
    %v257 = vstv %s256
    %v258 = vmul.f32 %v257, %v151
    %v259 = vadd.f32 %v255, %v258
    %s260 = sld [smem:[#allocation9 + $0x8]]
    %v261 = vstv %s260
    %v262 = vmul.f32 %v261, %v184
    %v263 = vadd.f32 %v259, %v262
    %s264 = sld [smem:[#allocation11 + $0x2]]
    %v265 = vstv %s264
    %v266 = vadd.f32 %v263, %v265
    %v267 = vxor.u32 %v266, 2147483648
    %v268 = vmul.f32 %v267, 1.442695
    %v269 = vpow.pop %v268
    %v270 = vadd.f32 %v269, 1.0
    %v271 = vrcp.pop %v270
    %v272 = vmul.f32 %v270, %v271
    %v273 = vsub.f32 1.0, %v272
    %v274 = vmul.f32 %v271, %v273
    %v275 = vadd.f32 %v271, %v274
    %vm276 = vweird.f32 %v270
    %vm277 = vweird.f32 %v271
    %vm278 = vmor %vm276, %vm277
    %v279 = vsel %vm278, %v271, %v275
    %v280 = vand.u32 2147483647, %v270
    %vm281 = vcmp.eq.f32.partialorder %v280, 8.507059e+37
    %v282 = vand.u32 %v270, 2147483648
    %v283 = vor.u32 1.1754944e-38, %v282
    %v284 = vsel %vm281, %v283, %v279
    %v285 = vmul.f32 1.0, %v284
    %286 = vst [vmem:[#allocation12 + $0x2] sm:$0x1] %v285
    // Predicated region
    $region42: #{tpu_custom_call.1} parent=1 // pred_check
      _
    $region43: #{tpu_custom_call.1} parent=1 // pred_check_branch
      %288 = sbr.rel (0) target = $region45
    $region44: #{tpu_custom_call.1} parent=1 // pred_region
      %290 = vsyncadd [#allocation4], 0
      %s292 = sshll.u32 [#allocation12], 4
      %s293 = int_to_ptr.vmem [resolvable:$true] %s292
      %s294 = sshll.u32 %s5, 4
      %s295 = int_to_ptr.hbm [resolvable:$true] %s294
      %297 = dma.vmem_to_hbm [thread:$0]  %s293, 64, %s295, [#allocation4]
    $region45: #{tpu_custom_call.1} parent=1 // pred_fallthru
      _
    // Predicated region
    $region46: #{tpu_custom_call.1} parent=1 // pred_check
      _
    $region47: #{tpu_custom_call.1} parent=1 // pred_check_branch
      %299 = sbr.rel (0) target = $region49
    $region48: #{tpu_custom_call.1} parent=1 // pred_region
      %301 = dma.done [#allocation4], 64
    $region49: #{tpu_custom_call.1} parent=1 // pred_fallthru
      _
    %302 = vsyncpa [#allocation3], 1
    %303 = vsyncpa [#allocation4], 1
    %304 = vsyncpa [#allocation5], 1
    %305 = vsyncpa [#allocation6], 1
    %306 = vsyncpa [#allocation10], 1

</llo_original>
